<compile_context>
chip_gen: v5e
topology: v5e:2x2
jax: 0.10.0
libtpu: 0.0.40
codegen_flags: <defaults>
</compile_context>

<pallas_src>
import functools

import jax
import jax.numpy as jnp
from jax.experimental import pallas as pl
from jax.experimental.pallas import tpu as pltpu

_NUM_F32_TEMPS = 10  # ~live (tn, C) f32 temporaries inside the kernel body (estimate)


def _vmem_capacity_bytes() -> int:
    """Per-TensorCore VMEM capacity; conservative 64 MiB fallback (valid on all generations)."""
    try:
        cap = int(getattr(pltpu.get_tpu_info(), "vmem_capacity_bytes", 0))
        if cap > 0:
            return cap
    except Exception:
        pass
    return 64 << 20


def _num_tensorcores() -> int:
    """2 TensorCores per chip on v7x (megacore grid split), 1 on v5e/v6e."""
    try:
        kind = jax.devices()[0].device_kind.lower()
    except Exception:
        return 1
    return 2 if ("v7" in kind or "7x" in kind) else 1


def _rdrop_kernel(l1_ref, l2_ref, gt_ref, w_ref, out_ref, acc_ref, *,
                  alpha: float, n_rows: int, needs_mask: bool):
    t = pl.program_id(1)  # row-tile index (reduction axis)

    @pl.when(t == 0)
    def _init():
        acc_ref[...] = jnp.zeros_like(acc_ref)

    tn, c = l1_ref.shape
    l1 = l1_ref[...].astype(jnp.float32)   # (tn, C)
    l2 = l2_ref[...].astype(jnp.float32)   # (tn, C)
    gt = gt_ref[...]                       # (tn, 1) int32
    w = w_ref[...]                         # (1, C) f32, resident across the grid

    if needs_mask:
        # Global row index of each tile row; rows >= N hold undefined block data.
        row0 = (pl.program_id(0) * pl.num_programs(1) + t) * tn
        row_valid = (row0 + jax.lax.broadcasted_iota(jnp.int32, (tn, 1), 0)) < n_rows
        # Zero invalid logits BEFORE exp (garbage could otherwise produce Inf/NaN):
        # zero rows give identical uniform softmaxes => exactly 0 KL contribution.
        l1 = jnp.where(row_valid, l1, 0.0)
        l2 = jnp.where(row_valid, l2, 0.0)

    def log_softmax_and_softmax(x):
        # Single exp per element: reuse e for both the log-probs and the probs.
        m = jnp.max(x, axis=-1, keepdims=True)
        z = x - m
        e = jnp.exp(z)
        s = jnp.sum(e, axis=-1, keepdims=True)
        lp = z - jnp.log(s)                      # log_softmax
        p = e * pl.reciprocal(s, approx=False)   # softmax
        return lp, p

    lp1, p1 = log_softmax_and_softmax(l1)
    lp2, p2 = log_softmax_and_softmax(l2)

    # Weighted CE for both logit sets, no materialized one-hot.
    hit = jax.lax.broadcasted_iota(jnp.int32, (tn, c), 1) == gt
    if needs_mask:
        hit = jnp.logical_and(hit, row_valid)    # gt of invalid rows is undefined
    ce_term = jnp.where(hit, w * (lp1 + lp2), 0.0)

    # Fused symmetric KL + CE in one (tn, C) expression, one lane reduction:
    #   0.5*(KL(p2||p1)+KL(p1||p2)) = 0.5 * sum_j (p2_j - p1_j) * (lp2_j - lp1_j)
    #   0.5*(ce1+ce2)               = -0.5 * sum_j [j==gt] * w_j * (lp1_j + lp2_j)
    fused = (0.5 * alpha) * ((p2 - p1) * (lp2 - lp1)) - 0.5 * ce_term

    # Per-row running partials (less drift than one serial scalar accumulator).
    acc_ref[...] += jnp.sum(fused, axis=-1, keepdims=True)   # (tn, 1)

    @pl.when(t == pl.num_programs(1) - 1)
    def _finalize():
        out_ref[0] = jnp.sum(acc_ref[...], axis=0, keepdims=True)   # per-core partial sum


def rdrop_loss(logits1, logits2, gt, weight, alpha=5.0, block_rows=None):
    """R-Drop loss matching the PyTorch RDropLoss forward.

    logits1, logits2: (N, C) float. **Prefer bf16** — the kernel upcasts to f32 in VMEM,
    so bf16 halves the dominant HBM traffic (near-2x on v5e/v6e).
    gt: (N,) int class targets; weight: (C,) per-class CE weights.
    Returns a scalar f32: mean over the batch of (CE(l1)+CE(l2))/2 + alpha*(KL(p1||p2)+KL(p2||p1))/2,
    CE computed with reduction='none' (so the final mean divides by N).
    """
    n, c = logits1.shape
    assert logits2.shape == (n, c)
    itemsize = jnp.dtype(logits1.dtype).itemsize

    num_cores = _num_tensorcores()
    vmem_cap = _vmem_capacity_bytes()

    # Per-row VMEM footprint: 2 logits arrays x 2 pipeline buffers at the input itemsize,
    # ~_NUM_F32_TEMPS live f32 temporaries, plus the lane-padded gt buffers / acc column.
    per_row_bytes = c * (4 * itemsize + _NUM_F32_TEMPS * 4) + 3 * 512

    if block_rows is None:
        budget = int(0.35 * vmem_cap)   # ~45 MiB on v5e/v6e (128 MiB VMEM), ~22 MiB on v7x (64 MiB)
        tn = (budget // per_row_bytes) // 8 * 8
    else:
        tn = (block_rows // 8) * 8
    tn = max(8, min(4096, tn))
    tn = min(tn, -(-n // 8) * 8)        # never larger than the (8-rounded) batch

    tiles_total = -(-n // tn)
    num_cores = max(1, min(num_cores, tiles_total))
    tiles_per_core = -(-tiles_total // num_cores)
    rows_covered = num_cores * tiles_per_core * tn
    needs_mask = rows_covered != n      # partial tail tile and/or core-split remainder

    gt2d = gt.astype(jnp.int32).reshape(n, 1)
    w2d = jnp.asarray(weight, jnp.float32).reshape(1, c)

    last_block = tiles_total - 1

    def row_block(ci, ti):
        # Clamp so grid points past the last tile re-read the final tile instead of issuing
        # an out-of-bounds DMA; their rows are fully masked inside the kernel.
        return (jnp.minimum(ci * tiles_per_core + ti, last_block), 0)

    # Triple-buffer the logits DMA only when large C forces tiny row tiles (many short DMAs).
    triple_buffer = (tn <= 64) and (tiles_per_core > 4)
    logits_pipeline = pl.Buffered(3) if triple_buffer else None

    def logits_spec():
        if logits_pipeline is None:
            return pl.BlockSpec((tn, c), row_block)
        return pl.BlockSpec((tn, c), row_block, pipeline_mode=logits_pipeline)

    # Right-size the scoped VMEM limit: estimated requirement with ~2x headroom, never the
    # full physical VMEM (important on v7x, 64 MiB/TC).
    est_vmem = tn * per_row_bytes + (4 << 20)
    vmem_limit = int(min(int(0.85 * vmem_cap), max(32 << 20, 2 * est_vmem)))

    partials = pl.pallas_call(
        functools.partial(_rdrop_kernel, alpha=float(alpha), n_rows=n, needs_mask=needs_mask),
        out_shape=jax.ShapeDtypeStruct((num_cores, 1, 1), jnp.float32),
        grid_spec=pltpu.PrefetchScalarGridSpec(
            num_scalar_prefetch=0,
            grid=(num_cores, tiles_per_core),
            in_specs=[
                logits_spec(),
                logits_spec(),
                pl.BlockSpec((tn, 1), row_block),
                pl.BlockSpec((1, c), lambda ci, ti: (0, 0)),   # class weights stay resident
            ],
            out_specs=pl.BlockSpec((1, 1, 1), lambda ci, ti: (ci, 0, 0)),
            scratch_shapes=[pltpu.VMEM((tn, 1), jnp.float32)],
        ),
        compiler_params=pltpu.CompilerParams(
            dimension_semantics=("parallel", "arbitrary"),
            vmem_limit_bytes=vmem_limit,
        ),
        cost_estimate=pl.CostEstimate(
            flops=10 * n * c,
            transcendentals=2 * n * c,
            bytes_accessed=2 * n * c * itemsize + 4 * n + 4 * c + 4 * num_cores,
        ),
    )(logits1, logits2, gt2d, w2d)

    # PyTorch module: CE uses reduction='none' and the final loss is .mean(-1) over the
    # batch, i.e. divide by N (NOT by sum(weight[gt])).
    return jnp.sum(partials[:, 0, 0]) / jnp.float32(n)


def _rdrop_loss_ref(logits1, logits2, gt, weight, alpha=5.0):
    lp1 = jax.nn.log_softmax(logits1.astype(jnp.float32), axis=-1)
    lp2 = jax.nn.log_softmax(logits2.astype(jnp.float32), axis=-1)
    p1, p2 = jnp.exp(lp1), jnp.exp(lp2)
    w = jnp.asarray(weight, jnp.float32)
    ce1 = -w[gt] * jnp.take_along_axis(lp1, gt[:, None], axis=-1)[:, 0]
    ce2 = -w[gt] * jnp.take_along_axis(lp2, gt[:, None], axis=-1)[:, 0]
    ce = 0.5 * (ce1 + ce2)
    kl = 0.5 * (jnp.sum(p2 * (lp2 - lp1), -1) + jnp.sum(p1 * (lp1 - lp2), -1))
    return jnp.mean(ce + alpha * kl)


if __name__ == "__main__":
    key = jax.random.PRNGKey(0)
    keys = jax.random.split(key, 10)

    # 1) Exact shapes from the reference module: l1, l2 = randn((2, 2)); gt = [1, 0];
    #    weight = [1, 1]; alpha = 5.  (Partial 8-row tile -> exercises the row masking.)
    l1 = jax.random.normal(keys[0], (2, 2), dtype=jnp.float32)
    l2 = jax.random.normal(keys[1], (2, 2), dtype=jnp.float32)
    gt = jnp.array([1, 0], dtype=jnp.int32)
    weight = jnp.array([1.0, 1.0], dtype=jnp.float32)

    loss = rdrop_loss(l1, l2, gt, weight, alpha=5.0)
    jax.block_until_ready(loss)
    ref = _rdrop_loss_ref(l1, l2, gt, weight, alpha=5.0)
    assert jnp.allclose(loss, ref, atol=1e-5, rtol=1e-5), (loss, ref)

    # 2) Ragged multi-tile case with NO wrapper-side padding: partial tail tile, non-uniform
    #    class weights, and (on 2-TC chips) an uneven core split that exercises the clamped
    #    out-of-range grid point.
    n2, c2 = 777, 512
    l1b = jax.random.normal(keys[2], (n2, c2), dtype=jnp.float32)
    l2b = jax.random.normal(keys[3], (n2, c2), dtype=jnp.float32)
    gtb = jax.random.randint(keys[4], (n2,), 0, c2, dtype=jnp.int32)
    wb = jax.random.uniform(keys[5], (c2,), minval=0.5, maxval=1.5, dtype=jnp.float32)

    loss2 = rdrop_loss(l1b, l2b, gtb, wb, alpha=5.0, block_rows=128)  # force >1 tile/core
    jax.block_until_ready(loss2)
    ref2 = _rdrop_loss_ref(l1b, l2b, gtb, wb, alpha=5.0)
    assert jnp.allclose(loss2, ref2, atol=5e-4, rtol=5e-4), (loss2, ref2)

    # 3) bf16 fast path (halved HBM traffic; in-kernel f32 upcast), auto tile sizing.
    n3, c3 = 300, 160
    l1c = jax.random.normal(keys[6], (n3, c3), dtype=jnp.float32).astype(jnp.bfloat16)
    l2c = jax.random.normal(keys[7], (n3, c3), dtype=jnp.float32).astype(jnp.bfloat16)
    gtc = jax.random.randint(keys[8], (n3,), 0, c3, dtype=jnp.int32)
    wc = jnp.ones((c3,), dtype=jnp.float32)

    loss3 = rdrop_loss(l1c, l2c, gtc, wc, alpha=5.0)
    jax.block_until_ready(loss3)
    ref3 = _rdrop_loss_ref(l1c, l2c, gtc, wc, alpha=5.0)
    assert jnp.allclose(loss3, ref3, atol=1e-3, rtol=1e-3), (loss3, ref3)

    print("KERNEL_OK")
</pallas_src>

<mosaic_0001>
module attributes {stable_mosaic.version = 11 : i64} {
  func.func @_rdrop_kernel(%arg0: i32, %arg1: i32, %arg2: memref<8x2xf32, #tpu.memory_space<vmem>>, %arg3: memref<8x2xf32, #tpu.memory_space<vmem>>, %arg4: memref<8x1xi32, #tpu.memory_space<vmem>>, %arg5: memref<1x2xf32, #tpu.memory_space<vmem>>, %arg6: memref<1x1x1xf32, #tpu.memory_space<vmem>>, %arg7: memref<8x1xf32, #tpu.memory_space<vmem>>) attributes {dimension_semantics = [#tpu.dimension_semantics<parallel>, #tpu.dimension_semantics<arbitrary>], iteration_bounds = array<i64: 1, 1>, scalar_prefetch = 0 : i64, scratch_operands = 1 : i64, tpu.core_type = #tpu.core_type<tc>, window_params = [{transform_indices = @transform_0, window_bounds = array<i64: 8, 2>}, {transform_indices = @transform_1, window_bounds = array<i64: 8, 2>}, {transform_indices = @transform_2, window_bounds = array<i64: 8, 1>}, {pipeline_mode = #tpu.pipeline_mode<synchronous>, transform_indices = @transform_3, window_bounds = array<i64: 1, 2>}, {transform_indices = @transform_4, window_bounds = array<i64: 1, 1, 1>}]} {
    %c0_i32 = arith.constant 0 : i32
    %0 = arith.cmpi eq, %arg1, %c0_i32 : i32
    %1 = arith.extui %0 : i1 to i32
    %c0_i32_0 = arith.constant 0 : i32
    %2 = arith.cmpi ne, %1, %c0_i32_0 : i32
    scf.if %2 {
      %cst_23 = arith.constant 0.000000e+00 : f32
      %75 = vector.broadcast %cst_23 : f32 to vector<8x1xf32>
      %c0_24 = arith.constant 0 : index
      %c0_25 = arith.constant 0 : index
      %76 = vector.load %arg7[%c0_24, %c0_25] : memref<8x1xf32, #tpu.memory_space<vmem>>, vector<8x1xf32>
      tpu.vector_store %arg7[%c0_24, %c0_25], %75 {strides = array<i32>} : memref<8x1xf32, #tpu.memory_space<vmem>>, vector<8x1xf32>,
    } else {
    }
    %c0 = arith.constant 0 : index
    %c0_1 = arith.constant 0 : index
    %3 = vector.load %arg2[%c0, %c0_1] : memref<8x2xf32, #tpu.memory_space<vmem>>, vector<8x2xf32>
    %c0_2 = arith.constant 0 : index
    %c0_3 = arith.constant 0 : index
    %4 = vector.load %arg3[%c0_2, %c0_3] : memref<8x2xf32, #tpu.memory_space<vmem>>, vector<8x2xf32>
    %c0_4 = arith.constant 0 : index
    %c0_5 = arith.constant 0 : index
    %5 = vector.load %arg4[%c0_4, %c0_5] : memref<8x1xi32, #tpu.memory_space<vmem>>, vector<8x1xi32>
    %c0_6 = arith.constant 0 : index
    %c0_7 = arith.constant 0 : index
    %6 = vector.load %arg5[%c0_6, %c0_7] : memref<1x2xf32, #tpu.memory_space<vmem>>, vector<1x2xf32>
    %c1_i32 = arith.constant 1 : i32
    %7 = arith.muli %arg0, %c1_i32 : i32
    %8 = arith.addi %7, %arg1 : i32
    %c8_i32 = arith.constant 8 : i32
    %9 = arith.muli %8, %c8_i32 : i32
    %10 = tpu.iota {dimensions = array<i32: 0>} : vector<8x1xi32>
    %11 = vector.broadcast %9 : i32 to vector<8x1xi32>
    %12 = arith.addi %11, %10 : vector<8x1xi32>
    %c2_i32 = arith.constant 2 : i32
    %13 = vector.broadcast %c2_i32 : i32 to vector<8x1xi32>
    %14 = arith.cmpi slt, %12, %13 : vector<8x1xi32>
    %cst = arith.constant 0.000000e+00 : f32
    %15 = vector.shape_cast %14 : vector<8x1xi1> to vector<8x1xi1>
    %16 = vector.broadcast %15 : vector<8x1xi1> to vector<8x2xi1>
    %17 = vector.broadcast %cst : f32 to vector<8x2xf32>
    %18 = arith.select %16, %3, %17 : vector<8x2xi1>, vector<8x2xf32>
    %cst_8 = arith.constant 0.000000e+00 : f32
    %19 = vector.shape_cast %14 : vector<8x1xi1> to vector<8x1xi1>
    %20 = vector.broadcast %19 : vector<8x1xi1> to vector<8x2xi1>
    %21 = vector.broadcast %cst_8 : f32 to vector<8x2xf32>
    %22 = arith.select %20, %4, %21 : vector<8x2xi1>, vector<8x2xf32>
    %cst_9 = arith.constant dense<0xFF800000> : vector<8xf32>
    %23 = vector.multi_reduction <maximumf>, %18, %cst_9 [1] : vector<8x2xf32> to vector<8xf32>
    %24 = vector.shape_cast %23 : vector<8xf32> to vector<8x1xf32>
    %25 = vector.broadcast %24 : vector<8x1xf32> to vector<8x2xf32>
    %26 = arith.subf %18, %25 : vector<8x2xf32>
    %27 = math.exp %26 : vector<8x2xf32>
    %cst_10 = arith.constant dense<0.000000e+00> : vector<8xf32>
    %28 = vector.multi_reduction <add>, %27, %cst_10 [1] : vector<8x2xf32> to vector<8xf32>
    %29 = vector.shape_cast %28 : vector<8xf32> to vector<8x1xf32>
    %30 = math.log %29 : vector<8x1xf32>
    %31 = vector.broadcast %30 : vector<8x1xf32> to vector<8x2xf32>
    %32 = arith.subf %26, %31 : vector<8x2xf32>
    %33 = tpu.reciprocal %29 : vector<8x1xf32> -> vector<8x1xf32>
    %34 = vector.broadcast %33 : vector<8x1xf32> to vector<8x2xf32>
    %35 = arith.mulf %27, %34 : vector<8x2xf32>
    %cst_11 = arith.constant dense<0xFF800000> : vector<8xf32>
    %36 = vector.multi_reduction <maximumf>, %22, %cst_11 [1] : vector<8x2xf32> to vector<8xf32>
    %37 = vector.shape_cast %36 : vector<8xf32> to vector<8x1xf32>
    %38 = vector.broadcast %37 : vector<8x1xf32> to vector<8x2xf32>
    %39 = arith.subf %22, %38 : vector<8x2xf32>
    %40 = math.exp %39 : vector<8x2xf32>
    %cst_12 = arith.constant dense<0.000000e+00> : vector<8xf32>
    %41 = vector.multi_reduction <add>, %40, %cst_12 [1] : vector<8x2xf32> to vector<8xf32>
    %42 = vector.shape_cast %41 : vector<8xf32> to vector<8x1xf32>
    %43 = math.log %42 : vector<8x1xf32>
    %44 = vector.broadcast %43 : vector<8x1xf32> to vector<8x2xf32>
    %45 = arith.subf %39, %44 : vector<8x2xf32>
    %46 = tpu.reciprocal %42 : vector<8x1xf32> -> vector<8x1xf32>
    %47 = vector.broadcast %46 : vector<8x1xf32> to vector<8x2xf32>
    %48 = arith.mulf %40, %47 : vector<8x2xf32>
    %49 = tpu.iota {dimensions = array<i32: 1>} : vector<8x2xi32>
    %50 = vector.broadcast %5 : vector<8x1xi32> to vector<8x2xi32>
    %51 = arith.cmpi eq, %49, %50 : vector<8x2xi32>
    %52 = vector.broadcast %14 : vector<8x1xi1> to vector<8x2xi1>
    %53 = arith.andi %51, %52 : vector<8x2xi1>
    %54 = arith.addf %32, %45 : vector<8x2xf32>
    %55 = vector.broadcast %6 : vector<1x2xf32> to vector<8x2xf32>
    %56 = arith.mulf %55, %54 : vector<8x2xf32>
    %cst_13 = arith.constant 0.000000e+00 : f32
    %57 = vector.broadcast %cst_13 : f32 to vector<8x2xf32>
    %58 = arith.select %53, %56, %57 : vector<8x2xi1>, vector<8x2xf32>
    %59 = arith.subf %48, %35 : vector<8x2xf32>
    %60 = arith.subf %45, %32 : vector<8x2xf32>
    %61 = arith.mulf %59, %60 : vector<8x2xf32>
    %cst_14 = arith.constant 2.500000e+00 : f32
    %62 = vector.broadcast %cst_14 : f32 to vector<8x2xf32>
    %63 = arith.mulf %62, %61 : vector<8x2xf32>
    %cst_15 = arith.constant 5.000000e-01 : f32
    %64 = vector.broadcast %cst_15 : f32 to vector<8x2xf32>
    %65 = arith.mulf %64, %58 : vector<8x2xf32>
    %66 = arith.subf %63, %65 : vector<8x2xf32>
    %c0_16 = arith.constant 0 : index
    %c0_17 = arith.constant 0 : index
    %67 = vector.load %arg7[%c0_16, %c0_17] : memref<8x1xf32, #tpu.memory_space<vmem>>, vector<8x1xf32>
    %cst_18 = arith.constant dense<0.000000e+00> : vector<8xf32>
    %68 = vector.multi_reduction <add>, %66, %cst_18 [1] : vector<8x2xf32> to vector<8xf32>
    %69 = vector.shape_cast %68 : vector<8xf32> to vector<8x1xf32>
    %70 = arith.addf %67, %69 : vector<8x1xf32>
    %c0_19 = arith.constant 0 : index
    %c0_20 = arith.constant 0 : index
    %71 = vector.load %arg7[%c0_19, %c0_20] : memref<8x1xf32, #tpu.memory_space<vmem>>, vector<8x1xf32>
    tpu.vector_store %arg7[%c0_19, %c0_20], %70 {strides = array<i32>} : memref<8x1xf32, #tpu.memory_space<vmem>>, vector<8x1xf32>,
    %c0_i32_21 = arith.constant 0 : i32
    %72 = arith.cmpi eq, %arg1, %c0_i32_21 : i32
    %73 = arith.extui %72 : i1 to i32
    %c0_i32_22 = arith.constant 0 : i32
    %74 = arith.cmpi ne, %73, %c0_i32_22 : i32
    scf.if %74 {
      %c0_23 = arith.constant 0 : index
      %c0_24 = arith.constant 0 : index
      %75 = vector.load %arg7[%c0_23, %c0_24] : memref<8x1xf32, #tpu.memory_space<vmem>>, vector<8x1xf32>
      %cst_25 = arith.constant dense<0.000000e+00> : vector<1xf32>
      %76 = vector.multi_reduction <add>, %75, %cst_25 [0] : vector<8x1xf32> to vector<1xf32>
      %77 = vector.shape_cast %76 : vector<1xf32> to vector<1x1xf32>
      %c0_26 = arith.constant 0 : index
      %c0_27 = arith.constant 0 : index
      %c0_28 = arith.constant 0 : index
      %78 = vector.load %arg6[%c0_26, %c0_27, %c0_28] : memref<1x1x1xf32, #tpu.memory_space<vmem>>, vector<1x1x1xf32>
      %79 = vector.shape_cast %78 : vector<1x1x1xf32> to vector<1x1xf32>
      %80 = vector.shape_cast %77 : vector<1x1xf32> to vector<1x1x1xf32>
      tpu.vector_store %arg6[%c0_26, %c0_27, %c0_28], %80 {strides = array<i32>} : memref<1x1x1xf32, #tpu.memory_space<vmem>>, vector<1x1x1xf32>,
    } else {
    }
    return
  }
  func.func @transform_0(%arg0: i32, %arg1: i32) -> (i32, i32) {
    %c1_i32 = arith.constant 1 : i32
    %0 = arith.muli %arg0, %c1_i32 : i32
    %1 = arith.addi %0, %arg1 : i32
    %c0_i32 = arith.constant 0 : i32
    %2 = arith.minsi %1, %c0_i32 : i32
    %c0_i32_0 = arith.constant 0 : i32
    %c0_i32_1 = arith.constant 0 : i32
    return %2, %c0_i32_0 : i32, i32
  }
  func.func @transform_1(%arg0: i32, %arg1: i32) -> (i32, i32) {
    %c1_i32 = arith.constant 1 : i32
    %0 = arith.muli %arg0, %c1_i32 : i32
    %1 = arith.addi %0, %arg1 : i32
    %c0_i32 = arith.constant 0 : i32
    %2 = arith.minsi %1, %c0_i32 : i32
    %c0_i32_0 = arith.constant 0 : i32
    %c0_i32_1 = arith.constant 0 : i32
    return %2, %c0_i32_0 : i32, i32
  }
  func.func @transform_2(%arg0: i32, %arg1: i32) -> (i32, i32) {
    %c1_i32 = arith.constant 1 : i32
    %0 = arith.muli %arg0, %c1_i32 : i32
    %1 = arith.addi %0, %arg1 : i32
    %c0_i32 = arith.constant 0 : i32
    %2 = arith.minsi %1, %c0_i32 : i32
    %c0_i32_0 = arith.constant 0 : i32
    %c0_i32_1 = arith.constant 0 : i32
    return %2, %c0_i32_0 : i32, i32
  }
  func.func @transform_3(%arg0: i32, %arg1: i32) -> (i32, i32) {
    %c0_i32 = arith.constant 0 : i32
    %c0_i32_0 = arith.constant 0 : i32
    %c0_i32_1 = arith.constant 0 : i32
    return %c0_i32, %c0_i32_0 : i32, i32
  }
  func.func @transform_4(%arg0: i32, %arg1: i32) -> (i32, i32, i32) {
    %c0_i32 = arith.constant 0 : i32
    %c0_i32_0 = arith.constant 0 : i32
    %c0_i32_1 = arith.constant 0 : i32
    return %arg0, %c0_i32, %c0_i32_0 : i32, i32, i32
  }
}

</mosaic_0001>

<llo_original>
// kernel: tpu_custom_call.1
$region0: #{tpu_custom_call.1}
  #allocation0 [shape = 'u32[]', space=smem, size = 0x4, offset = 0x4, fixed_abs, tag = 'smem constant byte address 0x4 - core index']
  #allocation1 [shape = 'u32[72,128]{1,0:T(1,128)}', space=vmem, size = 0x9000, scoped, tag = 'internal scratch']
  #allocation2 [shape = 'f32[8,1]{1,0:T(8,128)}', space=vmem, size = 0x1000, scoped, tag = 'scratch operand']
  %s0 = inlined_call_operand.vmem [shape: f32[2,2], index: 0, kind: input, shape index: {}]
  %s1 = inlined_call_operand.hbm [shape: f32[2,2], index: 1, kind: input, shape index: {}]
  %s2 = inlined_call_operand.vmem [shape: s32[2,1], index: 2, kind: input, shape index: {}]
  %s3 = inlined_call_operand.vmem [shape: f32[1,2], index: 3, kind: input, shape index: {}]
  %s4 = inlined_call_operand.hbm [shape: f32[1,1,1], index: 4, kind: output, shape index: {}]
  %s5 = sld [smem:[#allocation0]]
  $region38: #{tpu_custom_call.1} parent=0
    _
  %s7 = ssub.s32 1, %s5
  %s8 = scalar_select 0, %s7, %s5
  $region1: #{tpu_custom_call.1} parent=0
    #allocation3 [shape = 'u8[4096]{0}', space=vmem, size = 0x1000, scoped, tag = 'input window, operand 1, single buffered']
    #allocation4 [shape = 's32[1]{0}', space=sflag, size = 0x4, scoped, tag = 'scoped memory for tpu_custom_call.1']
    #allocation5 [shape = 's32[1]{0}', space=sflag, size = 0x4, scoped, tag = 'scoped memory for tpu_custom_call.1']
    #allocation6 [shape = 'u8[512]{0}', space=vmem, size = 0x400, scoped, tag = 'output window, operand 0, single buffered']
    %9 = vsyncpa [#allocation4], 0
    %10 = vsyncpa [#allocation5], 0
    // Predicated region
    $region2: #{tpu_custom_call.1} parent=1 // pred_check
      _
    $region3: #{tpu_custom_call.1} parent=1 // pred_check_branch
      %12 = sbr.rel (0) target = $region5
    $region4: #{tpu_custom_call.1} parent=1 // pred_region
      %s13 = sadd.s32 0, 0
      %p14 = scmp.lt.s32.totalorder %s13, 0
      %s15 = scalar_select %p14, %s13, 0
      %s16 = smul.u32 4, %s15
      %s17 = ssub.s32 1, %s16
      %s18 = smul.u32 2, %s17
      %p19 = scmp.lt.s32.totalorder %s16, 0
      %s20 = scalar_select %p19, %s16, 0
      %s21 = smul.addr %s20, 2
      %s22 = scalar_lea.vmem %s0, %s21
      %s23 = sadd.s32 0, 0
      %p24 = scmp.lt.s32.totalorder %s23, 0
      %s25 = scalar_select %p24, %s23, 0
      %s26 = smul.u32 4, %s25
      %s27 = ssub.s32 1, %s26
      %s28 = smul.u32 2, %s27
    $region5: #{tpu_custom_call.1} parent=1 // pred_fallthru
      _
    // Predicated region
    $region6: #{tpu_custom_call.1} parent=1 // pred_check
      _
    $region7: #{tpu_custom_call.1} parent=1 // pred_check_branch
      %30 = sbr.rel (0) target = $region9
    $region8: #{tpu_custom_call.1} parent=1 // pred_region
      %s31 = sadd.s32 0, 0
      %p32 = scmp.lt.s32.totalorder %s31, 0
      %s33 = scalar_select %p32, %s31, 0
      %s34 = smul.u32 4, %s33
      %s35 = ssub.s32 1, %s34
      %s36 = smul.u32 2, %s35
      %s37 = ssub.s32 8, %s36
      %s38 = sshll.u32 %s37, 4
      %39 = vsyncadd [#allocation4], %s38
      %p40 = scmp.ne.s32.totalorder 0, %s36
      %s41 = smul.addr %s34, 2
      %s42 = scalar_lea.hbm %s1, %s41
      %s43 = smul.u32 2, %s35
      %s44 = sshll.u32 %s42, 4
      %s45 = int_to_ptr.hbm [resolvable:$true] %s44
      %s46 = sshll.u32 [#allocation3], 4
      %s47 = int_to_ptr.vmem [resolvable:$true] %s46
      %s48 = sshll.u32 %s43, 4
      %52 = dma.hbm_to_vmem [thread:$0]  (%p40), %s45, %s48, %s47, [#allocation4], 32, 32, 2
    $region9: #{tpu_custom_call.1} parent=1 // pred_fallthru
      _
    // Predicated region
    $region10: #{tpu_custom_call.1} parent=1 // pred_check
      _
    $region11: #{tpu_custom_call.1} parent=1 // pred_check_branch
      %54 = sbr.rel (0) target = $region13
    $region12: #{tpu_custom_call.1} parent=1 // pred_region
      %s55 = sadd.s32 0, 0
      %p56 = scmp.lt.s32.totalorder %s55, 0
      %s57 = scalar_select %p56, %s55, 0
      %s58 = smul.u32 4, %s57
      %s59 = ssub.s32 1, %s58
      %s60 = smul.u32 2, %s59
      %p61 = scmp.lt.s32.totalorder %s58, 0
      %s62 = scalar_select %p61, %s58, 0
      %s63 = smul.addr %s62, 2
      %s64 = scalar_lea.vmem %s2, %s63
      %s65 = sadd.s32 0, 0
      %p66 = scmp.lt.s32.totalorder %s65, 0
      %s67 = scalar_select %p66, %s65, 0
      %s68 = smul.u32 4, %s67
      %s69 = ssub.s32 1, %s68
      %s70 = smul.u32 2, %s69
    $region13: #{tpu_custom_call.1} parent=1 // pred_fallthru
      _
    // Predicated region
    $region14: #{tpu_custom_call.1} parent=1 // pred_check
      _
    $region15: #{tpu_custom_call.1} parent=1 // pred_check_branch
      %72 = sbr.rel (0) target = $region17
    $region16: #{tpu_custom_call.1} parent=1 // pred_region
      _
    $region17: #{tpu_custom_call.1} parent=1 // pred_fallthru
      _
    // Predicated region
    $region18: #{tpu_custom_call.1} parent=1 // pred_check
      _
    $region19: #{tpu_custom_call.1} parent=1 // pred_check_branch
      %74 = sbr.rel (0) target = $region21
    $region20: #{tpu_custom_call.1} parent=1 // pred_region
      %76 = dma.done [#allocation4], 128
    $region21: #{tpu_custom_call.1} parent=1 // pred_fallthru
      _
    %s77 = sadd.s32 0, 0
    %p78 = scmp.lt.s32.totalorder %s77, 0
    %s79 = scalar_select %p78, %s77, 0
    %s80 = smul.u32 4, %s79
    %s81 = ssub.s32 1, %s80
    %s82 = smul.u32 2, %s81
    %p83 = scmp.lt.s32.totalorder %s80, 0
    %s84 = scalar_select %p83, %s80, 0
    %s85 = smul.addr %s84, 2
    %s86 = scalar_lea.vmem %s0, %s85
    %s87 = sadd.s32 0, 0
    %p88 = scmp.lt.s32.totalorder %s87, 0
    %s89 = scalar_select %p88, %s87, 0
    %s90 = smul.u32 4, %s89
    %s91 = ssub.s32 1, %s90
    %s92 = smul.u32 2, %s91
    %p93 = scmp.lt.s32.totalorder %s90, 0
    %s94 = scalar_select %p93, %s90, 0
    %s95 = smul.addr %s94, 2
    %s96 = scalar_lea.vmem %s2, %s95
    %s97 = sadd.s32 0, 0
    %p98 = scmp.lt.s32.totalorder %s97, 0
    %s99 = scalar_select %p98, %s97, 0
    %s100 = smul.u32 4, %s99
    %s101 = ssub.s32 1, %s100
    %s102 = smul.u32 2, %s101
    %p103 = scmp.lt.s32.totalorder %s100, 0
    %s104 = scalar_select %p103, %s100, 0
    %s105 = smul.addr %s104, 2
    %s106 = scalar_lea.vmem %s0, %s105
    %s107 = sadd.s32 0, 0
    %p108 = scmp.lt.s32.totalorder %s107, 0
    %s109 = scalar_select %p108, %s107, 0
    %s110 = smul.u32 4, %s109
    %s111 = ssub.s32 1, %s110
    %s112 = smul.u32 2, %s111
    %s113 = sadd.s32 0, 0
    %p114 = scmp.lt.s32.totalorder %s113, 0
    %s115 = scalar_select %p114, %s113, 0
    %s116 = smul.u32 4, %s115
    %s117 = ssub.s32 1, %s116
    %s118 = smul.u32 2, %s117
    %s119 = sadd.s32 0, 0
    %p120 = scmp.lt.s32.totalorder %s119, 0
    %s121 = scalar_select %p120, %s119, 0
    %s122 = smul.u32 4, %s121
    %s123 = ssub.s32 1, %s122
    %s124 = smul.u32 2, %s123
    %p125 = scmp.lt.s32.totalorder %s122, 0
    %s126 = scalar_select %p125, %s122, 0
    %s127 = smul.addr %s126, 2
    %s128 = scalar_lea.vmem %s2, %s127
    %s129 = sadd.s32 0, 0
    %p130 = scmp.lt.s32.totalorder %s129, 0
    %s131 = scalar_select %p130, %s129, 0
    %s132 = smul.u32 4, %s131
    %s133 = ssub.s32 1, %s132
    %s134 = smul.u32 2, %s133
    %p135 = scmp.eq.s32.totalorder 0, 0
    // Predicated region
    $region22: #{tpu_custom_call.1} parent=1 // pred_check
      %p136 = pneg %p135
    $region23: #{tpu_custom_call.1} parent=1 // pred_check_branch
      %138 = sbr.rel (%p136) target = $region25
    $region24: #{tpu_custom_call.1} parent=1 // pred_region
      %vm139 = vcmask 7168
      %140 = vst.msk [vmem:[#allocation2] sm:$0xff] %vm139, 0.0
    $region25: #{tpu_custom_call.1} parent=1 // pred_fallthru
      _
    %v141 = vld [vmem:[%s106] sm:$0xff]
    %v142 = vld [vmem:[#allocation3] sm:$0xff]
    %v143 = vld [vmem:[%s128] sm:$0xff]
    %v144 = vld [vmem:[%s3] sm:$0x1]
    %s145 = sadd.s32 0, 0
    %s146 = smul.u32 %s145, 8
    %v147 = vlaneseq
    %v148 = vshrl.u32 %v147, 7
    %v149 = vstv %s146
    %v150 = vadd.s32 %v149, %v148
    %vm151 = vcmp.lt.s32.totalorder %v150, 2
    %v152 = vsel %vm151, 1, 0
    %vm153 = vcmp.eq.s32.totalorder %v152, 1
    %v154 = vsel %vm153, %v141, 0.0
    %v155 = vsel %vm153, %v142, 0.0
    %vm156 = vcmask 15360
    %v157 = vsel %vm156, %v154, -inf
    %158 = vmax.xlane.f32.xlu0 %v157
    %v159 = vpop.xlane.xlu0 %158
    %v160 = vsub.f32 %v154, %v159
    %v161 = vmul.f32 %v160, 1.442695
    %v162 = vpow.pop %v161
    %v163 = vsel %vm156, %v162, 0.0
    %164 = vadd.xlane.f32.xlu0 %v163
    %v165 = vpop.xlane.xlu0 %164
    %v166 = vlog2.pop %v165
    %v167 = vmul.f32 %v166, 0.6931472
    %v168 = vsub.f32 %v160, %v167
    %v169 = vrcp.pop %v165
    %v170 = vmul.f32 %v165, %v169
    %v171 = vsub.f32 1.0, %v170
    %v172 = vmul.f32 %v169, %v171
    %v173 = vadd.f32 %v169, %v172
    %vm174 = vweird.f32 %v165
    %vm175 = vweird.f32 %v169
    %vm176 = vmor %vm174, %vm175
    %v177 = vsel %vm176, %v169, %v173
    %v178 = vand.u32 2147483647, %v165
    %vm179 = vcmp.eq.f32.partialorder %v178, 8.507059e+37
    %v180 = vand.u32 %v165, 2147483648
    %v181 = vor.u32 1.1754944e-38, %v180
    %v182 = vsel %vm179, %v181, %v177
    %v183 = vmul.f32 %v162, %v182
    %v184 = vsel %vm156, %v155, -inf
    %185 = vmax.xlane.f32.xlu0 %v184
    %v186 = vpop.xlane.xlu0 %185
    %v187 = vsub.f32 %v155, %v186
    %v188 = vmul.f32 %v187, 1.442695
    %v189 = vpow.pop %v188
    %v190 = vsel %vm156, %v189, 0.0
    %191 = vadd.xlane.f32.xlu0 %v190
    %v192 = vpop.xlane.xlu0 %191
    %v193 = vlog2.pop %v192
    %v194 = vmul.f32 %v193, 0.6931472
    %v195 = vsub.f32 %v187, %v194
    %v196 = vrcp.pop %v192
    %v197 = vmul.f32 %v192, %v196
    %v198 = vsub.f32 1.0, %v197
    %v199 = vmul.f32 %v196, %v198
    %v200 = vadd.f32 %v196, %v199
    %vm201 = vweird.f32 %v192
    %vm202 = vweird.f32 %v196
    %vm203 = vmor %vm201, %vm202
    %v204 = vsel %vm203, %v196, %v200
    %v205 = vand.u32 2147483647, %v192
    %vm206 = vcmp.eq.f32.partialorder %v205, 8.507059e+37
    %v207 = vand.u32 %v192, 2147483648
    %v208 = vor.u32 1.1754944e-38, %v207
    %v209 = vsel %vm206, %v208, %v204
    %v210 = vmul.f32 %v189, %v209
    %v211 = vlaneseq
    %v212 = vand.u32 %v211, 127
    %213 = vset.pattern.permute.xlu0 0
    %214 = vperm.xlu0 %213, %v143
    %v215 = vpop.permute.xlu0 %214
    %vm216 = vcmp.eq.s32.totalorder %v212, %v215
    %vm217 = vmand %vm216, %vm153
    %v218 = vadd.f32 %v168, %v195
    %v220 = vperm.slane %v144, 0
    %v222 = vmul.f32 %v220, %v218
    %v223 = vsel %vm217, %v222, 0.0
    %v224 = vsub.f32 %v210, %v183
    %v225 = vsub.f32 %v195, %v168
    %v226 = vmul.f32 %v224, %v225
    %v227 = vmul.f32 %v226, 2.5
    %v228 = vmul.f32 %v223, 0.5
    %v229 = vsub.f32 %v227, %v228
    %v230 = vld [vmem:[#allocation2] sm:$0xff]
    %v231 = vsel %vm156, %v229, 0.0
    %232 = vadd.xlane.f32.xlu0 %v231
    %v233 = vpop.xlane.xlu0 %232
    %v234 = vadd.f32 %v230, %v233
    %vm235 = vcmask 7168
    %236 = vst.msk [vmem:[#allocation2] sm:$0xff] %vm235, %v234
    // Predicated region
    $region26: #{tpu_custom_call.1} parent=1 // pred_check
      %p237 = pneg %p135
    $region27: #{tpu_custom_call.1} parent=1 // pred_check_branch
      %239 = sbr.rel (%p237) target = $region29
    $region28: #{tpu_custom_call.1} parent=1 // pred_region
      %v240 = vld [vmem:[#allocation2] sm:$0xff]
      %v241 = vsel %vm235, %v240, 0.0
      %v242 = vrot.slane %v241, 4
      %v243 = vadd.f32 %v241, %v242
      %v244 = vrot.slane %v243, 2
      %v245 = vadd.f32 %v243, %v244
      %v246 = vrot.slane %v245, 1
      %v247 = vadd.f32 %v245, %v246
      %vm248 = vcmask 0
      %249 = vst.msk [vmem:[#allocation6] sm:$0x1] %vm248, %v247
    $region29: #{tpu_custom_call.1} parent=1 // pred_fallthru
      _
    // Predicated region
    $region30: #{tpu_custom_call.1} parent=1 // pred_check
      _
    $region31: #{tpu_custom_call.1} parent=1 // pred_check_branch
      %251 = sbr.rel (0) target = $region33
    $region32: #{tpu_custom_call.1} parent=1 // pred_region
      %253 = vsyncadd [#allocation5], 0
      %s255 = sshll.u32 [#allocation6], 4
      %s256 = int_to_ptr.vmem [resolvable:$true] %s255
      %s257 = sshll.u32 %s4, 4
      %s258 = int_to_ptr.hbm [resolvable:$true] %s257
      %260 = dma.vmem_to_hbm [thread:$0]  %s256, 16, %s258, [#allocation5]
    $region33: #{tpu_custom_call.1} parent=1 // pred_fallthru
      _
    // Predicated region
    $region34: #{tpu_custom_call.1} parent=1 // pred_check
      _
    $region35: #{tpu_custom_call.1} parent=1 // pred_check_branch
      %262 = sbr.rel (0) target = $region37
    $region36: #{tpu_custom_call.1} parent=1 // pred_region
      %264 = dma.done [#allocation5], 16
    $region37: #{tpu_custom_call.1} parent=1 // pred_fallthru
      _
    %265 = vsyncpa [#allocation4], 1
    %266 = vsyncpa [#allocation5], 1

</llo_original>
